<compile_context>
chip_gen: v7x
topology: tpu7x:2x2x1
jax: 0.10.0
libtpu: 0.0.40
codegen_flags: <defaults>
</compile_context>

<pallas_src>
import functools

import jax
import jax.numpy as jnp
from jax import lax
from jax.experimental import pallas as pl
from jax.experimental.pallas import tpu as pltpu


def _round_up(x, m):
    return ((x + m - 1) // m) * m


def _pick_tile(padded_dim, candidates=(512, 256, 128)):
    """Largest MXU-friendly tile that divides a 128-aligned padded dim."""
    for c in candidates:
        if padded_dim % c == 0:
            return c
    return padded_dim


def _vmem_limit(block_bytes):
    """Scoped-VMEM limit sized from the actual double-buffered blocks (+headroom
    for Mosaic internal scratch), instead of a blanket 32 MiB (review #10)."""
    need = 2 * block_bytes          # BlockSpec double-buffering
    return int(min(64 << 20, max(8 << 20, 4 * need)))


# ---------------------------------------------------------------------------
# Kernel 1: one (tm, tn) tile of P = relu(T_cat @ W_cat + b_sum).
# Accumulates directly into the f32 output block (no scratch).  For typical
# D_total the K grid axis has a single step, so init / matmul / bias+ReLU all
# happen in that one step.
# ---------------------------------------------------------------------------
def project_relu_kernel(t_ref, w_ref, b_ref, o_ref):
    k = pl.program_id(2)

    @pl.when(k == 0)
    def _init():
        o_ref[...] = jnp.zeros_like(o_ref)

    o_ref[...] += jnp.dot(t_ref[...], w_ref[...],
                          preferred_element_type=jnp.float32)

    @pl.when(k == pl.num_programs(2) - 1)
    def _finalize():
        # Bias broadcast + ReLU only in the epilogue.
        o_ref[...] = jnp.maximum(o_ref[...] + b_ref[...], 0.0)


def _project_tables(t_cat, w_cat, b_row, *, tm, tn, tk):
    v_pad, d_pad = t_cat.shape
    _, o_pad = w_cat.shape
    grid = (v_pad // tm, o_pad // tn, d_pad // tk)
    block_bytes = (tm * tk + tk * tn + tn + tm * tn) * 4
    return pl.pallas_call(
        project_relu_kernel,
        out_shape=jax.ShapeDtypeStruct((v_pad, o_pad), jnp.float32),
        grid_spec=pltpu.PrefetchScalarGridSpec(
            num_scalar_prefetch=0,
            grid=grid,
            in_specs=[
                pl.BlockSpec((tm, tk), lambda i, j, k: (i, k)),   # T tile
                pl.BlockSpec((tk, tn), lambda i, j, k: (k, j)),   # W tile
                pl.BlockSpec((1, tn), lambda i, j, k: (0, j)),    # bias tile
            ],
            out_specs=pl.BlockSpec((tm, tn), lambda i, j, k: (i, j)),
        ),
        compiler_params=pltpu.CompilerParams(
            dimension_semantics=("parallel", "parallel", "arbitrary"),
            vmem_limit_bytes=_vmem_limit(block_bytes),
        ),
    )(t_cat, w_cat, b_row)


# ---------------------------------------------------------------------------
# Kernel 2: per-token gather of P as a one-hot MXU matmul (small-vocab regime).
# P stays resident in VMEM (constant block index), so the only steady-state HBM
# traffic is the indices in and `output_size` columns of output out.
# ---------------------------------------------------------------------------
def gather_onehot_kernel(idx_ref, p_ref, o_ref):
    tt = idx_ref.shape[0]
    v_pad = p_ref.shape[0]
    cols = lax.broadcasted_iota(jnp.int32, (tt, v_pad), 1)
    onehot = jnp.where(idx_ref[...] == cols, 1.0, 0.0).astype(p_ref.dtype)
    acc = jnp.dot(onehot, p_ref[...], preferred_element_type=jnp.float32)
    o_ref[...] = acc[:, : o_ref.shape[1]].astype(o_ref.dtype)


def _gather_rows_pallas(p, flat_idx, output_size, *, tok_tile=256):
    n_tok = flat_idx.shape[0]
    v_pad, o_pad = p.shape
    tt = min(tok_tile, _round_up(n_tok, 8))
    n_pad = _round_up(n_tok, tt)
    idx_col = jnp.pad(flat_idx.astype(jnp.int32), (0, n_pad - n_tok)).reshape(n_pad, 1)
    block_bytes = (tt + v_pad * o_pad + tt * output_size + tt * v_pad) * 4
    out = pl.pallas_call(
        gather_onehot_kernel,
        out_shape=jax.ShapeDtypeStruct((n_pad, output_size), p.dtype),
        grid_spec=pltpu.PrefetchScalarGridSpec(
            num_scalar_prefetch=0,
            grid=(n_pad // tt,),
            in_specs=[
                pl.BlockSpec((tt, 1), lambda t: (t, 0)),           # token indices
                pl.BlockSpec((v_pad, o_pad), lambda t: (0, 0)),    # P, VMEM-resident
            ],
            out_specs=pl.BlockSpec((tt, output_size), lambda t: (t, 0)),
        ),
        compiler_params=pltpu.CompilerParams(
            dimension_semantics=("parallel",),
            vmem_limit_bytes=_vmem_limit(block_bytes),
        ),
    )(idx_col, p)
    return out[:n_tok]


# ---------------------------------------------------------------------------
# Module-level wrappers
# ---------------------------------------------------------------------------
def precompute_projected_table(tables, weights, biases, output_size):
    """Fold every (embedding, Linear) pair into one projected table
    P[v] = relu(sum_i T_i[v] @ W_i + b_i).  Cache the result whenever the
    parameters are static between calls — the per-token forward then reduces to
    a pure row gather (review #8)."""
    vocab = tables[0].shape[0]
    t_cat = jnp.concatenate(tables, axis=1)                  # (vocab, D_total)
    w_cat = jnp.concatenate(weights, axis=0)                 # (D_total, O)
    b_sum = functools.reduce(lambda a, c: a + c, biases)     # (O,)
    d_total = t_cat.shape[1]

    # Right-sized padding: vocab only needs 8-row alignment unless it is large
    # enough to want 256-row MXU tiles; lane dims pad to 128 (review #3).
    if vocab <= 512:
        v_pad = _round_up(vocab, 8)
        tm = v_pad
    else:
        tm = 256
        v_pad = _round_up(vocab, tm)
    d_pad = _round_up(d_total, 128)
    o_pad = _round_up(output_size, 128)
    tn = o_pad if o_pad <= 512 else _pick_tile(o_pad)

    # Single-pass K whenever the double-buffered tiles fit VMEM (review #2).
    single_pass_bytes = 2 * (tm * d_pad + d_pad * tn + tm * tn + tn) * 4
    tk = d_pad if single_pass_bytes <= (24 << 20) else _pick_tile(d_pad)

    # Zero padding is inert: padded K columns contribute 0, padded vocab rows
    # are never gathered, padded output columns are never read back.
    t_cat = jnp.pad(t_cat, ((0, v_pad - vocab), (0, d_pad - d_total)))
    w_cat = jnp.pad(w_cat, ((0, d_pad - d_total), (0, o_pad - output_size)))
    b_row = jnp.pad(b_sum, (0, o_pad - output_size)).reshape(1, o_pad)

    # TODO(synk): on v6e/v7x cast t_cat/w_cat (and optionally P) to bf16 for a
    # faster one-shot projection / smaller table; kept f32 here for exactness.
    return _project_tables(t_cat, w_cat, b_row, tm=tm, tn=tn, tk=tk)


def proj_sum_embedding_lookup(x_idx, p, output_size):
    """Per-token forward: gather rows of the precomputed projected table."""
    flat_idx = x_idx.reshape(-1)
    v_pad, o_pad = p.shape
    small_table = v_pad <= 512 and v_pad * o_pad * p.dtype.itemsize <= (2 << 20)
    if small_table:
        out = _gather_rows_pallas(p, flat_idx, output_size)
    else:
        # Large-vocab fallback: XLA gather, reading only the real output
        # columns (slice BEFORE the gather — review #4).
        out = jnp.take(p[:, :output_size], flat_idx, axis=0)
    return out.reshape(*x_idx.shape, output_size)


def proj_sum_embedding(x_idx, tables, weights, biases, output_size):
    """Full ProjSumEmbedding forward (recomputes P; prefer caching P via
    precompute_projected_table when the parameters are static)."""
    p = precompute_projected_table(tables, weights, biases, output_size)
    return proj_sum_embedding_lookup(x_idx, p, output_size)


def make_params(key, vocab, embed_dims, output_size):
    """Deterministic synthetic parameters mirroring the torch module __init__."""
    tables, weights, biases = [], [], []
    for d in embed_dims:
        key, k_tbl, k_w, k_b = jax.random.split(key, 4)
        # pretrained embedding matrix (vocab, d)
        tables.append(jax.random.normal(k_tbl, (vocab, d), jnp.float32))
        # nn.Linear weight is (O, d) with xavier_uniform; store its transpose (d, O)
        bound = (6.0 / (d + output_size)) ** 0.5
        weights.append(jax.random.uniform(k_w, (d, output_size), jnp.float32,
                                          minval=-bound, maxval=bound))
        # bias ~ U(-1e-4, 1e-4)
        biases.append(jax.random.uniform(k_b, (output_size,), jnp.float32,
                                         minval=-1e-4, maxval=1e-4))
    return tables, weights, biases


if __name__ == "__main__":
    key = jax.random.PRNGKey(0)

    batch, seq = 2, 8
    vocab = 50
    embed_dims = [16, 24]      # two pretrained embedding matrices
    output_size = 32

    key, k_idx = jax.random.split(key)
    x = jax.random.randint(k_idx, (batch, seq), 0, vocab, dtype=jnp.int32)

    tables, weights, biases = make_params(key, vocab, embed_dims, output_size)

    # Params are static in this example, so compute P once (cached) and run the
    # per-token forward as the Pallas gather kernel only.
    p = precompute_projected_table(tables, weights, biases, output_size)
    out = proj_sum_embedding_lookup(x, p, output_size)
    out = jax.block_until_ready(out)

    # Reference check in plain JAX (matches the PyTorch forward).
    ref = jnp.zeros((batch, seq, output_size), jnp.float32)
    for tbl, w, b in zip(tables, weights, biases):
        ref = ref + (tbl[x] @ w + b)
    ref = jnp.maximum(ref, 0.0)
    assert out.shape == (batch, seq, output_size)
    assert jnp.allclose(out, ref, atol=1e-4), "mismatch vs reference"

    print("KERNEL_OK")
</pallas_src>

<mosaic_0001>
module attributes {stable_mosaic.version = 11 : i64} {
  func.func @project_relu_kernel(%arg0: i32, %arg1: i32, %arg2: i32, %arg3: memref<56x128xf32, #tpu.memory_space<vmem>>, %arg4: memref<128x128xf32, #tpu.memory_space<vmem>>, %arg5: memref<1x128xf32, #tpu.memory_space<vmem>>, %arg6: memref<56x128xf32, #tpu.memory_space<vmem>>) attributes {dimension_semantics = [#tpu.dimension_semantics<parallel>, #tpu.dimension_semantics<parallel>, #tpu.dimension_semantics<arbitrary>], iteration_bounds = array<i64: 1, 1, 1>, scalar_prefetch = 0 : i64, scratch_operands = 0 : i64, tpu.core_type = #tpu.core_type<tc>, window_params = [{transform_indices = @transform_0, window_bounds = array<i64: 56, 128>}, {transform_indices = @transform_1, window_bounds = array<i64: 128, 128>}, {transform_indices = @transform_2, window_bounds = array<i64: 1, 128>}, {transform_indices = @transform_3, window_bounds = array<i64: 56, 128>}]} {
    %c0_i32 = arith.constant 0 : i32
    %0 = arith.cmpi eq, %arg2, %c0_i32 : i32
    %1 = arith.extui %0 : i1 to i32
    %c0_i32_0 = arith.constant 0 : i32
    %2 = arith.cmpi ne, %1, %c0_i32_0 : i32
    scf.if %2 {
      %cst_10 = arith.constant 0.000000e+00 : f32
      %12 = vector.broadcast %cst_10 : f32 to vector<56x128xf32>
      %c0_11 = arith.constant 0 : index
      %c0_12 = arith.constant 0 : index
      %13 = vector.load %arg6[%c0_11, %c0_12] : memref<56x128xf32, #tpu.memory_space<vmem>>, vector<56x128xf32>
      tpu.vector_store %arg6[%c0_11, %c0_12], %12 {strides = array<i32>} : memref<56x128xf32, #tpu.memory_space<vmem>>, vector<56x128xf32>,
    } else {
    }
    %c0 = arith.constant 0 : index
    %c0_1 = arith.constant 0 : index
    %3 = vector.load %arg6[%c0, %c0_1] : memref<56x128xf32, #tpu.memory_space<vmem>>, vector<56x128xf32>
    %c0_2 = arith.constant 0 : index
    %c0_3 = arith.constant 0 : index
    %4 = vector.load %arg3[%c0_2, %c0_3] : memref<56x128xf32, #tpu.memory_space<vmem>>, vector<56x128xf32>
    %c0_4 = arith.constant 0 : index
    %c0_5 = arith.constant 0 : index
    %5 = vector.load %arg4[%c0_4, %c0_5] : memref<128x128xf32, #tpu.memory_space<vmem>>, vector<128x128xf32>
    %cst = arith.constant dense<0.000000e+00> : vector<56x128xf32>
    %6 = tpu.matmul %4, %5, %cst {dimension_numbers = #tpu.dot_dimension_numbers<[1], [0], [0], [1], [0, 0, 1, 1], [], []>} : vector<56x128xf32>, vector<128x128xf32>, vector<56x128xf32> -> vector<56x128xf32>
    %7 = arith.addf %3, %6 : vector<56x128xf32>
    %c0_6 = arith.constant 0 : index
    %c0_7 = arith.constant 0 : index
    %8 = vector.load %arg6[%c0_6, %c0_7] : memref<56x128xf32, #tpu.memory_space<vmem>>, vector<56x128xf32>
    tpu.vector_store %arg6[%c0_6, %c0_7], %7 {strides = array<i32>} : memref<56x128xf32, #tpu.memory_space<vmem>>, vector<56x128xf32>,
    %c0_i32_8 = arith.constant 0 : i32
    %9 = arith.cmpi eq, %arg2, %c0_i32_8 : i32
    %10 = arith.extui %9 : i1 to i32
    %c0_i32_9 = arith.constant 0 : i32
    %11 = arith.cmpi ne, %10, %c0_i32_9 : i32
    scf.if %11 {
      %c0_10 = arith.constant 0 : index
      %c0_11 = arith.constant 0 : index
      %12 = vector.load %arg6[%c0_10, %c0_11] : memref<56x128xf32, #tpu.memory_space<vmem>>, vector<56x128xf32>
      %c0_12 = arith.constant 0 : index
      %c0_13 = arith.constant 0 : index
      %13 = vector.load %arg5[%c0_12, %c0_13] : memref<1x128xf32, #tpu.memory_space<vmem>>, vector<1x128xf32>
      %14 = vector.broadcast %13 : vector<1x128xf32> to vector<56x128xf32>
      %15 = arith.addf %12, %14 : vector<56x128xf32>
      %cst_14 = arith.constant 0.000000e+00 : f32
      %16 = vector.broadcast %cst_14 : f32 to vector<56x128xf32>
      %17 = arith.maximumf %15, %16 : vector<56x128xf32>
      %c0_15 = arith.constant 0 : index
      %c0_16 = arith.constant 0 : index
      %18 = vector.load %arg6[%c0_15, %c0_16] : memref<56x128xf32, #tpu.memory_space<vmem>>, vector<56x128xf32>
      tpu.vector_store %arg6[%c0_15, %c0_16], %17 {strides = array<i32>} : memref<56x128xf32, #tpu.memory_space<vmem>>, vector<56x128xf32>,
    } else {
    }
    return
  }
  func.func @transform_0(%arg0: i32, %arg1: i32, %arg2: i32) -> (i32, i32) {
    %c0_i32 = arith.constant 0 : i32
    return %arg0, %arg2 : i32, i32
  }
  func.func @transform_1(%arg0: i32, %arg1: i32, %arg2: i32) -> (i32, i32) {
    %c0_i32 = arith.constant 0 : i32
    return %arg2, %arg1 : i32, i32
  }
  func.func @transform_2(%arg0: i32, %arg1: i32, %arg2: i32) -> (i32, i32) {
    %c0_i32 = arith.constant 0 : i32
    %c0_i32_0 = arith.constant 0 : i32
    return %c0_i32, %arg1 : i32, i32
  }
  func.func @transform_3(%arg0: i32, %arg1: i32, %arg2: i32) -> (i32, i32) {
    %c0_i32 = arith.constant 0 : i32
    return %arg0, %arg1 : i32, i32
  }
}

</mosaic_0001>

<llo_original>
// kernel: tpu_custom_call.1
$region0: #{tpu_custom_call.1}
  #allocation0 [shape = 'u32[]', space=smem, size = 0x4, offset = 0x4, fixed_abs, tag = 'smem constant byte address 0x4 - core index']
  #allocation1 [shape = 'u32[144,128]{1,0:T(1,128)}', space=vmem, size = 0x12000, scoped, tag = 'internal scratch']
  %s0 = inlined_call_operand.hbm [shape: f32[56,128], index: 0, kind: input, shape index: {}]
  %s1 = inlined_call_operand.hbm [shape: f32[128,128], index: 1, kind: input, shape index: {}]
  %s2 = inlined_call_operand.vmem [shape: f32[1,128], index: 2, kind: input, shape index: {}]
  %s3 = inlined_call_operand.hbm [shape: f32[56,128], index: 3, kind: output, shape index: {}]
  %s4 = sld [smem:[#allocation0]]
  $region38: #{tpu_custom_call.1} parent=0
    _
  %s6 = ssub.s32 1, %s4
  %s7 = scalar_select 0, %s6, %s4
  $region1: #{tpu_custom_call.1} parent=0
    #allocation2 [shape = 'u8[28672]{0}', space=vmem, size = 0x7000, scoped, tag = 'input window, operand 0, single buffered']
    #allocation3 [shape = 's32[1]{0}', space=sflag, size = 0x4, scoped, tag = 'scoped memory for tpu_custom_call.1']
    #allocation4 [shape = 's32[1]{0}', space=sflag, size = 0x4, scoped, tag = 'scoped memory for tpu_custom_call.1']
    #allocation5 [shape = 'u8[65536]{0}', space=vmem, size = 0x10000, scoped, tag = 'input window, operand 1, single buffered']
    #allocation6 [shape = 's32[1]{0}', space=sflag, size = 0x4, scoped, tag = 'scoped memory for tpu_custom_call.1']
    #allocation7 [shape = 'u8[28672]{0}', space=vmem, size = 0x7000, scoped, tag = 'output window, operand 0, single buffered']
    %8 = vsyncpa [#allocation3], 0
    %9 = vsyncpa [#allocation6], 0
    %10 = vsyncpa [#allocation4], 0
    // Predicated region
    $region2: #{tpu_custom_call.1} parent=1 // pred_check
      _
    $region3: #{tpu_custom_call.1} parent=1 // pred_check_branch
      %12 = sbr.rel (0) target = $region5
    $region4: #{tpu_custom_call.1} parent=1 // pred_region
      %s14 = ssub.s32 896, 896
      %15 = vsyncadd [#allocation3], %s14
      %s16 = sshll.u32 [#allocation2], 4
      %s17 = int_to_ptr.vmem [resolvable:$true] %s16
      %22 = dma.hbm_to_vmem [thread:$0]  %s0, 896, %s17, [#allocation3], 128, 128, 8
    $region5: #{tpu_custom_call.1} parent=1 // pred_fallthru
      _
    // Predicated region
    $region6: #{tpu_custom_call.1} parent=1 // pred_check
      _
    $region7: #{tpu_custom_call.1} parent=1 // pred_check_branch
      %24 = sbr.rel (0) target = $region9
    $region8: #{tpu_custom_call.1} parent=1 // pred_region
      %s26 = ssub.s32 2048, 2048
      %27 = vsyncadd [#allocation6], %s26
      %s28 = sshll.u32 [#allocation5], 4
      %s29 = int_to_ptr.vmem [resolvable:$true] %s28
      %34 = dma.hbm_to_vmem [thread:$0]  %s1, 2048, %s29, [#allocation6], 128, 128, 8
    $region9: #{tpu_custom_call.1} parent=1 // pred_fallthru
      _
    // Predicated region
    $region10: #{tpu_custom_call.1} parent=1 // pred_check
      _
    $region11: #{tpu_custom_call.1} parent=1 // pred_check_branch
      %36 = sbr.rel (0) target = $region13
    $region12: #{tpu_custom_call.1} parent=1 // pred_region
      _
    $region13: #{tpu_custom_call.1} parent=1 // pred_fallthru
      _
    // Predicated region
    $region14: #{tpu_custom_call.1} parent=1 // pred_check
      _
    $region15: #{tpu_custom_call.1} parent=1 // pred_check_branch
      %38 = sbr.rel (0) target = $region17
    $region16: #{tpu_custom_call.1} parent=1 // pred_region
      %39 = dma.done [#allocation3], 896
    $region17: #{tpu_custom_call.1} parent=1 // pred_fallthru
      _
    // Predicated region
    $region18: #{tpu_custom_call.1} parent=1 // pred_check
      _
    $region19: #{tpu_custom_call.1} parent=1 // pred_check_branch
      %41 = sbr.rel (0) target = $region21
    $region20: #{tpu_custom_call.1} parent=1 // pred_region
      %42 = dma.done [#allocation6], 2048
    $region21: #{tpu_custom_call.1} parent=1 // pred_fallthru
      _
    %p43 = scmp.eq.s32.totalorder 0, 0
    // Predicated region
    $region22: #{tpu_custom_call.1} parent=1 // pred_check
      %p44 = pneg %p43
    $region23: #{tpu_custom_call.1} parent=1 // pred_check_branch
      %46 = sbr.rel (%p44) target = $region25
    $region24: #{tpu_custom_call.1} parent=1 // pred_region
      %47 = vst [vmem:[#allocation7] sm:$0xff] 0.0
      %48 = vst [vmem:[#allocation7 + $0x8] sm:$0xff] 0.0
      %49 = vst [vmem:[#allocation7 + $0x10] sm:$0xff] 0.0
      %50 = vst [vmem:[#allocation7 + $0x18] sm:$0xff] 0.0
      %51 = vst [vmem:[#allocation7 + $0x20] sm:$0xff] 0.0
      %52 = vst [vmem:[#allocation7 + $0x28] sm:$0xff] 0.0
      %53 = vst [vmem:[#allocation7 + $0x30] sm:$0xff] 0.0
    $region25: #{tpu_custom_call.1} parent=1 // pred_fallthru
      _
    %v54 = vld [vmem:[#allocation7] sm:$0xff]
    %v55 = vld [vmem:[#allocation7 + $0x8] sm:$0xff]
    %v56 = vld [vmem:[#allocation7 + $0x10] sm:$0xff]
    %v57 = vld [vmem:[#allocation7 + $0x18] sm:$0xff]
    %v58 = vld [vmem:[#allocation7 + $0x20] sm:$0xff]
    %v59 = vld [vmem:[#allocation7 + $0x28] sm:$0xff]
    %v60 = vld [vmem:[#allocation7 + $0x30] sm:$0xff]
    %v61 = vld [vmem:[#allocation2] sm:$0xff]
    %v62 = vld [vmem:[#allocation2 + $0x8] sm:$0xff]
    %v63 = vld [vmem:[#allocation2 + $0x10] sm:$0xff]
    %v64 = vld [vmem:[#allocation2 + $0x18] sm:$0xff]
    %v65 = vld [vmem:[#allocation2 + $0x20] sm:$0xff]
    %v66 = vld [vmem:[#allocation2 + $0x28] sm:$0xff]
    %v67 = vld [vmem:[#allocation2 + $0x30] sm:$0xff]
    %v68 = vld [vmem:[#allocation5] sm:$0xff]
    %v69 = vld [vmem:[#allocation5 + $0x8] sm:$0xff]
    %v70 = vld [vmem:[#allocation5 + $0x10] sm:$0xff]
    %v71 = vld [vmem:[#allocation5 + $0x18] sm:$0xff]
    %v72 = vld [vmem:[#allocation5 + $0x20] sm:$0xff]
    %v73 = vld [vmem:[#allocation5 + $0x28] sm:$0xff]
    %v74 = vld [vmem:[#allocation5 + $0x30] sm:$0xff]
    %v75 = vld [vmem:[#allocation5 + $0x38] sm:$0xff]
    %v76 = vld [vmem:[#allocation5 + $0x40] sm:$0xff]
    %v77 = vld [vmem:[#allocation5 + $0x48] sm:$0xff]
    %v78 = vld [vmem:[#allocation5 + $0x50] sm:$0xff]
    %v79 = vld [vmem:[#allocation5 + $0x58] sm:$0xff]
    %v80 = vld [vmem:[#allocation5 + $0x60] sm:$0xff]
    %v81 = vld [vmem:[#allocation5 + $0x68] sm:$0xff]
    %v82 = vld [vmem:[#allocation5 + $0x70] sm:$0xff]
    %v83 = vld [vmem:[#allocation5 + $0x78] sm:$0xff]
    %84 = vmatprep.subr.mxu0 0.0
    %85 = vmatpush1.msra.mxu0 %v68
    %86 = vmatprep.subr.mxu0 0.0
    %87 = vmatpush1.msra.mxu0 %v69
    %88 = vmatprep.subr.mxu0 0.0
    %89 = vmatpush1.msra.mxu0 %v70
    %90 = vmatprep.subr.mxu0 0.0
    %91 = vmatpush1.msra.mxu0 %v71
    %92 = vmatprep.subr.mxu0 0.0
    %93 = vmatpush1.msra.mxu0 %v72
    %94 = vmatprep.subr.mxu0 0.0
    %95 = vmatpush1.msra.mxu0 %v73
    %96 = vmatprep.subr.mxu0 0.0
    %97 = vmatpush1.msra.mxu0 %v74
    %98 = vmatprep.subr.mxu0 0.0
    %99 = vmatpush1.msra.mxu0 %v75
    %100 = vmatprep.subr.mxu0 0.0
    %101 = vmatpush1.msra.mxu0 %v76
    %102 = vmatprep.subr.mxu0 0.0
    %103 = vmatpush1.msra.mxu0 %v77
    %104 = vmatprep.subr.mxu0 0.0
    %105 = vmatpush1.msra.mxu0 %v78
    %106 = vmatprep.subr.mxu0 0.0
    %107 = vmatpush1.msra.mxu0 %v79
    %108 = vmatprep.subr.mxu0 0.0
    %109 = vmatpush1.msra.mxu0 %v80
    %110 = vmatprep.subr.mxu0 0.0
    %111 = vmatpush1.msra.mxu0 %v81
    %112 = vmatprep.subr.mxu0 0.0
    %113 = vmatpush1.msra.mxu0 %v82
    %114 = vmatprep.subr.mxu0 0.0
    %115 = vmatpush1.msra.mxu0 %v83
    %116 = vmatprep.subr.mxu0 0.0
    %117 = vmatpush1.msra.mxu0 0.0
    %118 = vmatprep.subr.mxu0 0.0
    %119 = vmatpush1.msra.mxu0 0.0
    %120 = vmatprep.subr.mxu0 0.0
    %121 = vmatpush1.msra.mxu0 0.0
    %122 = vmatprep.subr.mxu0 0.0
    %123 = vmatpush1.msra.mxu0 0.0
    %124 = vmatprep.subr.mxu0 0.0
    %125 = vmatpush1.msra.mxu0 0.0
    %126 = vmatprep.subr.mxu0 0.0
    %127 = vmatpush1.msra.mxu0 0.0
    %128 = vmatprep.subr.mxu0 0.0
    %129 = vmatpush1.msra.mxu0 0.0
    %130 = vmatprep.subr.mxu0 0.0
    %131 = vmatpush1.msra.mxu0 0.0
    %132 = vmatprep.subr.mxu0 0.0
    %133 = vmatpush1.msra.mxu0 0.0
    %134 = vmatprep.subr.mxu0 0.0
    %135 = vmatpush1.msra.mxu0 0.0
    %136 = vmatprep.subr.mxu0 0.0
    %137 = vmatpush1.msra.mxu0 0.0
    %138 = vmatprep.subr.mxu0 0.0
    %139 = vmatpush1.msra.mxu0 0.0
    %140 = vmatprep.subr.mxu0 0.0
    %141 = vmatpush1.msra.mxu0 0.0
    %142 = vmatprep.subr.mxu0 0.0
    %143 = vmatpush1.msra.mxu0 0.0
    %144 = vmatprep.subr.mxu0 0.0
    %145 = vmatpush1.msra.mxu0 0.0
    %146 = vmatprep.subr.mxu0 0.0
    %147 = vmatpush1.msra.mxu0 0.0
    %148 = vmatprep.mubr.f32.mxu0 0.0
    %149 = vmatmul.mubr.f32.gmra.mrb[0].mxu0 %v61
    %v150 = vpop.f32.mrb[0].mxu0
    %v151 = vadd.f32 0.0, %v150
    %v152 = vpop.f32.mrb[0].mxu0
    %153 = vmatprep.mubr.f32.mxu0 0.0
    %154 = vmatmul.mubr.f32.gmra.mrb[0].mxu0 %v62
    %v155 = vpop.f32.mrb[0].mxu0
    %v156 = vadd.f32 0.0, %v155
    %v157 = vpop.f32.mrb[0].mxu0
    %158 = vmatprep.mubr.f32.mxu0 0.0
    %159 = vmatmul.mubr.f32.gmra.mrb[0].mxu0 %v63
    %v160 = vpop.f32.mrb[0].mxu0
    %v161 = vadd.f32 0.0, %v160
    %v162 = vpop.f32.mrb[0].mxu0
    %163 = vmatprep.mubr.f32.mxu0 0.0
    %164 = vmatmul.mubr.f32.gmra.mrb[0].mxu0 %v64
    %v165 = vpop.f32.mrb[0].mxu0
    %v166 = vadd.f32 0.0, %v165
    %v167 = vpop.f32.mrb[0].mxu0
    %168 = vmatprep.mubr.f32.mxu0 0.0
    %169 = vmatmul.mubr.f32.gmra.mrb[0].mxu0 %v65
    %v170 = vpop.f32.mrb[0].mxu0
    %v171 = vadd.f32 0.0, %v170
    %v172 = vpop.f32.mrb[0].mxu0
    %173 = vmatprep.mubr.f32.mxu0 0.0
    %174 = vmatmul.mubr.f32.gmra.mrb[0].mxu0 %v66
    %v175 = vpop.f32.mrb[0].mxu0
    %v176 = vadd.f32 0.0, %v175
    %v177 = vpop.f32.mrb[0].mxu0
    %178 = vmatprep.mubr.f32.mxu0 0.0
    %179 = vmatmul.mubr.f32.gmra.mrb[0].mxu0 %v67
    %v180 = vpop.f32.mrb[0].mxu0
    %v181 = vadd.f32 0.0, %v180
    %v182 = vpop.f32.mrb[0].mxu0
    %183 = vdwg.mxu0
    %v184 = vadd.f32 %v54, %v151
    %v185 = vadd.f32 %v55, %v156
    %v186 = vadd.f32 %v56, %v161
    %v187 = vadd.f32 %v57, %v166
    %v188 = vadd.f32 %v58, %v171
    %v189 = vadd.f32 %v59, %v176
    %v190 = vadd.f32 %v60, %v181
    %191 = vst [vmem:[#allocation7] sm:$0xff] %v184
    %192 = vst [vmem:[#allocation7 + $0x8] sm:$0xff] %v185
    %193 = vst [vmem:[#allocation7 + $0x10] sm:$0xff] %v186
    %194 = vst [vmem:[#allocation7 + $0x18] sm:$0xff] %v187
    %195 = vst [vmem:[#allocation7 + $0x20] sm:$0xff] %v188
    %196 = vst [vmem:[#allocation7 + $0x28] sm:$0xff] %v189
    %197 = vst [vmem:[#allocation7 + $0x30] sm:$0xff] %v190
    // Predicated region
    $region26: #{tpu_custom_call.1} parent=1 // pred_check
      %p198 = pneg %p43
    $region27: #{tpu_custom_call.1} parent=1 // pred_check_branch
      %200 = sbr.rel (%p198) target = $region29
    $region28: #{tpu_custom_call.1} parent=1 // pred_region
      %v201 = vld [vmem:[#allocation7] sm:$0xff]
      %v202 = vld [vmem:[#allocation7 + $0x8] sm:$0xff]
      %v203 = vld [vmem:[#allocation7 + $0x10] sm:$0xff]
      %v204 = vld [vmem:[#allocation7 + $0x18] sm:$0xff]
      %v205 = vld [vmem:[#allocation7 + $0x20] sm:$0xff]
      %v206 = vld [vmem:[#allocation7 + $0x28] sm:$0xff]
      %v207 = vld [vmem:[#allocation7 + $0x30] sm:$0xff]
      %v208 = vld [vmem:[%s2] sm:$0x1]
      %v210 = vlaneseq
      %v211 = vshrl.u32 %v210, 7
      %v212 = vsub.s32 0, %v211
      %v213 = vrot.slane %v208, %v212
      %v215 = vadd.f32 %v201, %v213
      %v216 = vadd.f32 %v202, %v213
      %v217 = vadd.f32 %v203, %v213
      %v218 = vadd.f32 %v204, %v213
      %v219 = vadd.f32 %v205, %v213
      %v220 = vadd.f32 %v206, %v213
      %v221 = vadd.f32 %v207, %v213
      %v222 = vmax.f32 %v215, 0.0
      %v223 = vmax.f32 %v216, 0.0
      %v224 = vmax.f32 %v217, 0.0
      %v225 = vmax.f32 %v218, 0.0
      %v226 = vmax.f32 %v219, 0.0
      %v227 = vmax.f32 %v220, 0.0
      %v228 = vmax.f32 %v221, 0.0
      %229 = vst [vmem:[#allocation7] sm:$0xff] %v222
      %230 = vst [vmem:[#allocation7 + $0x8] sm:$0xff] %v223
      %231 = vst [vmem:[#allocation7 + $0x10] sm:$0xff] %v224
      %232 = vst [vmem:[#allocation7 + $0x18] sm:$0xff] %v225
      %233 = vst [vmem:[#allocation7 + $0x20] sm:$0xff] %v226
      %234 = vst [vmem:[#allocation7 + $0x28] sm:$0xff] %v227
      %235 = vst [vmem:[#allocation7 + $0x30] sm:$0xff] %v228
    $region29: #{tpu_custom_call.1} parent=1 // pred_fallthru
      _
    // Predicated region
    $region30: #{tpu_custom_call.1} parent=1 // pred_check
      _
    $region31: #{tpu_custom_call.1} parent=1 // pred_check_branch
      %237 = sbr.rel (0) target = $region33
    $region32: #{tpu_custom_call.1} parent=1 // pred_region
      %s239 = ssub.s32 896, 896
      %240 = vsyncadd [#allocation4], %s239
      %s241 = sshll.u32 [#allocation7], 4
      %s242 = int_to_ptr.vmem [resolvable:$true] %s241
      %247 = dma.vmem_to_hbm [thread:$0]  %s242, 896, %s3, [#allocation4], 128, 128, 8
    $region33: #{tpu_custom_call.1} parent=1 // pred_fallthru
      _
    // Predicated region
    $region34: #{tpu_custom_call.1} parent=1 // pred_check
      _
    $region35: #{tpu_custom_call.1} parent=1 // pred_check_branch
      %249 = sbr.rel (0) target = $region37
    $region36: #{tpu_custom_call.1} parent=1 // pred_region
      %250 = dma.done [#allocation4], 896
    $region37: #{tpu_custom_call.1} parent=1 // pred_fallthru
      _
    %251 = vsyncpa [#allocation3], 1
    %252 = vsyncpa [#allocation6], 1
    %253 = vsyncpa [#allocation4], 1

</llo_original>
